<compile_context>
chip_gen: v7x
topology: tpu7x:2x2x1
jax: 0.10.0
libtpu: 0.0.40
codegen_flags: <defaults>
</compile_context>

<pallas_src>
import jax
import jax.numpy as jnp
from jax.experimental import pallas as pl
from jax.experimental.pallas import tpu as pltpu

_LANE = 128


def _block3_kernel(x_ref, adj_ref, w1_ref, b1_ref, w2_ref, b2_ref, w3_ref, b3_ref,
                   o_ref):
    """Fused 3x (DenseSAGEConv + ReLU + L2-normalize) for one batch element."""
    x = x_ref[0]          # (N, Cin)
    adj = adj_ref[0]      # (N, N)
    n = adj.shape[0]

    # --- done ONCE for all three layers ------------------------------------
    # add self loops: adj[i, i] = 1
    rows = jax.lax.broadcasted_iota(jnp.int32, (n, n), 0)
    cols = jax.lax.broadcasted_iota(jnp.int32, (n, n), 1)
    adj = jnp.where(rows == cols, 1.0, adj)

    # inverse degree (clamp(deg, 1) then reciprocal on the EUP)
    deg = jnp.sum(adj, axis=-1, keepdims=True)                # (N, 1)
    inv_deg = pl.reciprocal(jnp.maximum(deg, 1.0))            # exact recip
    # ------------------------------------------------------------------------

    def layer(h, w_ref, b_ref):
        w = w_ref[...]
        cin, cout = w.shape
        # Row-scaling by 1/deg commutes with right-multiplication by W, so we can
        # pick whichever order contracts the N^2-sized matmul over fewer features.
        if cout < cin:
            agg = jnp.dot(adj,
                          jnp.dot(h, w, preferred_element_type=jnp.float32),
                          preferred_element_type=jnp.float32)
        else:
            agg = jnp.dot(jnp.dot(adj, h, preferred_element_type=jnp.float32),
                          w, preferred_element_type=jnp.float32)
        out = agg * inv_deg + b_ref[...]
        # ReLU
        out = jnp.maximum(out, 0.0)
        # F.normalize(p=2, dim=-1): x / max(||x||, 1e-12)  ==  x * rsqrt(max(ss, 1e-24))
        sumsq = jnp.sum(out * out, axis=-1, keepdims=True)
        return out * jax.lax.rsqrt(jnp.maximum(sumsq, 1e-24))

    h1 = layer(x, w1_ref, b1_ref)     # (N, H)   stays in VMEM/vregs
    h2 = layer(h1, w2_ref, b2_ref)    # (N, H)   stays in VMEM/vregs
    h3 = layer(h2, w3_ref, b3_ref)    # (N, Cp)  lane-dense (Cp % 128 == 0)
    o_ref[0] = h3


def block_3hop_fused(x, adj, params):
    """Fused Block_3hop forward (jp=False, mask=None).

    x: (B, N, Cin), adj: (B, N, N), params: ((w1,b1),(w2,b2),(w3,b3)) -> (B, N, Cout)
    """
    (w1, b1), (w2, b2), (w3, b3) = params
    B, N, Cin = x.shape
    H = w1.shape[1]
    Cout = w3.shape[1]

    # Pad the last layer to a lane-dense (multiple of 128) output so the final HBM
    # store is an unmasked vst. Padded columns stay exactly zero through +0 bias,
    # ReLU and normalize, and are sliced off below. MXU lane-padding makes the
    # extra columns free on the matmul side.
    Cp = max(_LANE, ((Cout + _LANE - 1) // _LANE) * _LANE)
    if Cp != Cout:
        w3p = jnp.pad(w3, ((0, 0), (0, Cp - Cout)))
        b3p = jnp.pad(b3, ((0, 0), (0, Cp - Cout)))
    else:
        w3p, b3p = w3, b3

    # Advisory cost hint for XLA scheduling around the custom call.
    flops = 2 * B * (N * N * Cin + N * Cin * H
                     + N * N * H + N * H * H
                     + N * N * H + N * H * Cp)
    transcendentals = 4 * B * N  # 1x reciprocal + 3x rsqrt per node per batch
    bytes_accessed = 4 * (x.size + adj.size + B * N * Cp
                          + w1.size + b1.size + w2.size + b2.size
                          + w3p.size + b3p.size)

    out = pl.pallas_call(
        _block3_kernel,
        out_shape=jax.ShapeDtypeStruct((B, N, Cp), jnp.float32),
        grid_spec=pltpu.PrefetchScalarGridSpec(
            num_scalar_prefetch=0,
            grid=(B,),
            in_specs=[
                pl.BlockSpec((1, N, Cin), lambda b: (b, 0, 0)),
                pl.BlockSpec((1, N, N), lambda b: (b, 0, 0)),
                pl.BlockSpec((Cin, H), lambda b: (0, 0)),
                pl.BlockSpec((1, H), lambda b: (0, 0)),
                pl.BlockSpec((H, H), lambda b: (0, 0)),
                pl.BlockSpec((1, H), lambda b: (0, 0)),
                pl.BlockSpec((H, Cp), lambda b: (0, 0)),
                pl.BlockSpec((1, Cp), lambda b: (0, 0)),
            ],
            out_specs=pl.BlockSpec((1, N, Cp), lambda b: (b, 0, 0)),
        ),
        compiler_params=pltpu.CompilerParams(
            dimension_semantics=("parallel",),
        ),
        cost_estimate=pl.CostEstimate(
            flops=flops,
            transcendentals=transcendentals,
            bytes_accessed=bytes_accessed,
        ),
    )(x, adj, w1, b1, w2, b2, w3p, b3p)
    return out[..., :Cout]


block_3hop = jax.jit(block_3hop_fused)


def _block_3hop_ref(x, adj, params):
    """Pure-JAX reference with the original torch semantics (for correctness)."""
    B, N, _ = x.shape
    eye = jnp.eye(N, dtype=adj.dtype)
    adjp = jnp.where(eye[None] > 0, 1.0, adj)
    deg = jnp.clip(jnp.sum(adjp, axis=-1, keepdims=True), 1.0, None)
    h = x
    for (w, b) in params:
        agg = jnp.einsum("bij,bjc->bic", adjp, h) / deg
        out = jnp.maximum(jnp.einsum("bic,cd->bid", agg, w) + b, 0.0)
        norm = jnp.maximum(jnp.sqrt(jnp.sum(out * out, axis=-1, keepdims=True)), 1e-12)
        h = out / norm
    return h


def init_params(key, in_channels, hidden_channels, out_channels):
    ks = jax.random.split(key, 6)

    def linear(kw, kb, cin, cout):
        scale = 1.0 / jnp.sqrt(jnp.float32(cin))
        w = jax.random.uniform(kw, (cin, cout), jnp.float32, -scale, scale)
        b = jax.random.uniform(kb, (1, cout), jnp.float32, -scale, scale)
        return w, b

    p1 = linear(ks[0], ks[1], in_channels, hidden_channels)
    p2 = linear(ks[2], ks[3], hidden_channels, hidden_channels)
    p3 = linear(ks[4], ks[5], hidden_channels, out_channels)
    return (p1, p2, p3)


if __name__ == "__main__":
    B, N = 2, 16
    in_channels, hidden_channels, out_channels = 4, 32, 8

    key = jax.random.PRNGKey(0)
    kx, kadj, kp = jax.random.split(key, 3)

    x = jax.random.normal(kx, (B, N, in_channels), jnp.float32)
    # random 0/1 adjacency
    adj = (jax.random.uniform(kadj, (B, N, N)) > 0.7).astype(jnp.float32)

    params = init_params(kp, in_channels, hidden_channels, out_channels)

    out = block_3hop(x, adj, params)
    jax.block_until_ready(out)

    assert out.shape == (B, N, out_channels)
    assert jnp.all(jnp.isfinite(out))

    ref = _block_3hop_ref(x, adj, params)
    assert jnp.allclose(out, ref, rtol=2e-3, atol=2e-3), float(jnp.max(jnp.abs(out - ref)))

    print("KERNEL_OK")
</pallas_src>

<mosaic_0001>
module attributes {stable_mosaic.version = 11 : i64} {
  func.func @_block3_kernel(%arg0: i32, %arg1: memref<1x16x4xf32, #tpu.memory_space<vmem>>, %arg2: memref<1x16x16xf32, #tpu.memory_space<vmem>>, %arg3: memref<4x32xf32, #tpu.memory_space<vmem>>, %arg4: memref<1x32xf32, #tpu.memory_space<vmem>>, %arg5: memref<32x32xf32, #tpu.memory_space<vmem>>, %arg6: memref<1x32xf32, #tpu.memory_space<vmem>>, %arg7: memref<32x128xf32, #tpu.memory_space<vmem>>, %arg8: memref<1x128xf32, #tpu.memory_space<vmem>>, %arg9: memref<1x16x128xf32, #tpu.memory_space<vmem>>) attributes {dimension_semantics = [#tpu.dimension_semantics<parallel>], iteration_bounds = array<i64: 2>, scalar_prefetch = 0 : i64, scratch_operands = 0 : i64, tpu.core_type = #tpu.core_type<tc>, window_params = [{transform_indices = @transform_0, window_bounds = array<i64: 1, 16, 4>}, {transform_indices = @transform_1, window_bounds = array<i64: 1, 16, 16>}, {pipeline_mode = #tpu.pipeline_mode<synchronous>, transform_indices = @transform_2, window_bounds = array<i64: 4, 32>}, {pipeline_mode = #tpu.pipeline_mode<synchronous>, transform_indices = @transform_3, window_bounds = array<i64: 1, 32>}, {pipeline_mode = #tpu.pipeline_mode<synchronous>, transform_indices = @transform_4, window_bounds = array<i64: 32, 32>}, {pipeline_mode = #tpu.pipeline_mode<synchronous>, transform_indices = @transform_5, window_bounds = array<i64: 1, 32>}, {pipeline_mode = #tpu.pipeline_mode<synchronous>, transform_indices = @transform_6, window_bounds = array<i64: 32, 128>}, {pipeline_mode = #tpu.pipeline_mode<synchronous>, transform_indices = @transform_7, window_bounds = array<i64: 1, 128>}, {transform_indices = @transform_8, window_bounds = array<i64: 1, 16, 128>}]} {
    %c0 = arith.constant 0 : index
    %c0_0 = arith.constant 0 : index
    %c0_1 = arith.constant 0 : index
    %0 = vector.load %arg1[%c0, %c0_0, %c0_1] : memref<1x16x4xf32, #tpu.memory_space<vmem>>, vector<1x16x4xf32>
    %1 = vector.shape_cast %0 : vector<1x16x4xf32> to vector<16x4xf32>
    %c0_2 = arith.constant 0 : index
    %c0_3 = arith.constant 0 : index
    %c0_4 = arith.constant 0 : index
    %2 = vector.load %arg2[%c0_2, %c0_3, %c0_4] : memref<1x16x16xf32, #tpu.memory_space<vmem>>, vector<1x16x16xf32>
    %3 = vector.shape_cast %2 : vector<1x16x16xf32> to vector<16x16xf32>
    %4 = tpu.iota {dimensions = array<i32: 0>} : vector<16x16xi32>
    %5 = tpu.iota {dimensions = array<i32: 1>} : vector<16x16xi32>
    %6 = arith.cmpi eq, %4, %5 : vector<16x16xi32>
    %cst = arith.constant 1.000000e+00 : f32
    %7 = vector.broadcast %cst : f32 to vector<16x16xf32>
    %8 = arith.select %6, %7, %3 : vector<16x16xi1>, vector<16x16xf32>
    %cst_5 = arith.constant dense<0.000000e+00> : vector<16xf32>
    %9 = vector.multi_reduction <add>, %8, %cst_5 [1] : vector<16x16xf32> to vector<16xf32>
    %10 = vector.shape_cast %9 : vector<16xf32> to vector<16x1xf32>
    %cst_6 = arith.constant 1.000000e+00 : f32
    %11 = vector.broadcast %cst_6 : f32 to vector<16x1xf32>
    %12 = arith.maximumf %10, %11 : vector<16x1xf32>
    %13 = tpu.reciprocal %12 : vector<16x1xf32> -> vector<16x1xf32>
    %c0_7 = arith.constant 0 : index
    %c0_8 = arith.constant 0 : index
    %14 = vector.load %arg3[%c0_7, %c0_8] : memref<4x32xf32, #tpu.memory_space<vmem>>, vector<4x32xf32>
    %cst_9 = arith.constant dense<0.000000e+00> : vector<16x4xf32>
    %15 = tpu.matmul %8, %1, %cst_9 {dimension_numbers = #tpu.dot_dimension_numbers<[1], [0], [0], [1], [0, 0, 1, 1], [], []>} : vector<16x16xf32>, vector<16x4xf32>, vector<16x4xf32> -> vector<16x4xf32>
    %cst_10 = arith.constant dense<0.000000e+00> : vector<16x32xf32>
    %16 = tpu.matmul %15, %14, %cst_10 {dimension_numbers = #tpu.dot_dimension_numbers<[1], [0], [0], [1], [0, 0, 1, 1], [], []>} : vector<16x4xf32>, vector<4x32xf32>, vector<16x32xf32> -> vector<16x32xf32>
    %17 = vector.broadcast %13 : vector<16x1xf32> to vector<16x32xf32>
    %18 = arith.mulf %16, %17 : vector<16x32xf32>
    %c0_11 = arith.constant 0 : index
    %c0_12 = arith.constant 0 : index
    %19 = vector.load %arg4[%c0_11, %c0_12] : memref<1x32xf32, #tpu.memory_space<vmem>>, vector<1x32xf32>
    %20 = vector.broadcast %19 : vector<1x32xf32> to vector<16x32xf32>
    %21 = arith.addf %18, %20 : vector<16x32xf32>
    %cst_13 = arith.constant 0.000000e+00 : f32
    %22 = vector.broadcast %cst_13 : f32 to vector<16x32xf32>
    %23 = arith.maximumf %21, %22 : vector<16x32xf32>
    %24 = arith.mulf %23, %23 : vector<16x32xf32>
    %cst_14 = arith.constant dense<0.000000e+00> : vector<16xf32>
    %25 = vector.multi_reduction <add>, %24, %cst_14 [1] : vector<16x32xf32> to vector<16xf32>
    %26 = vector.shape_cast %25 : vector<16xf32> to vector<16x1xf32>
    %cst_15 = arith.constant 1.000000e-24 : f32
    %27 = vector.broadcast %cst_15 : f32 to vector<16x1xf32>
    %28 = arith.maximumf %26, %27 : vector<16x1xf32>
    %29 = math.rsqrt %28 : vector<16x1xf32>
    %30 = vector.broadcast %29 : vector<16x1xf32> to vector<16x32xf32>
    %31 = arith.mulf %23, %30 : vector<16x32xf32>
    %c0_16 = arith.constant 0 : index
    %c0_17 = arith.constant 0 : index
    %32 = vector.load %arg5[%c0_16, %c0_17] : memref<32x32xf32, #tpu.memory_space<vmem>>, vector<32x32xf32>
    %cst_18 = arith.constant dense<0.000000e+00> : vector<16x32xf32>
    %33 = tpu.matmul %8, %31, %cst_18 {dimension_numbers = #tpu.dot_dimension_numbers<[1], [0], [0], [1], [0, 0, 1, 1], [], []>} : vector<16x16xf32>, vector<16x32xf32>, vector<16x32xf32> -> vector<16x32xf32>
    %cst_19 = arith.constant dense<0.000000e+00> : vector<16x32xf32>
    %34 = tpu.matmul %33, %32, %cst_19 {dimension_numbers = #tpu.dot_dimension_numbers<[1], [0], [0], [1], [0, 0, 1, 1], [], []>} : vector<16x32xf32>, vector<32x32xf32>, vector<16x32xf32> -> vector<16x32xf32>
    %35 = vector.broadcast %13 : vector<16x1xf32> to vector<16x32xf32>
    %36 = arith.mulf %34, %35 : vector<16x32xf32>
    %c0_20 = arith.constant 0 : index
    %c0_21 = arith.constant 0 : index
    %37 = vector.load %arg6[%c0_20, %c0_21] : memref<1x32xf32, #tpu.memory_space<vmem>>, vector<1x32xf32>
    %38 = vector.broadcast %37 : vector<1x32xf32> to vector<16x32xf32>
    %39 = arith.addf %36, %38 : vector<16x32xf32>
    %cst_22 = arith.constant 0.000000e+00 : f32
    %40 = vector.broadcast %cst_22 : f32 to vector<16x32xf32>
    %41 = arith.maximumf %39, %40 : vector<16x32xf32>
    %42 = arith.mulf %41, %41 : vector<16x32xf32>
    %cst_23 = arith.constant dense<0.000000e+00> : vector<16xf32>
    %43 = vector.multi_reduction <add>, %42, %cst_23 [1] : vector<16x32xf32> to vector<16xf32>
    %44 = vector.shape_cast %43 : vector<16xf32> to vector<16x1xf32>
    %cst_24 = arith.constant 1.000000e-24 : f32
    %45 = vector.broadcast %cst_24 : f32 to vector<16x1xf32>
    %46 = arith.maximumf %44, %45 : vector<16x1xf32>
    %47 = math.rsqrt %46 : vector<16x1xf32>
    %48 = vector.broadcast %47 : vector<16x1xf32> to vector<16x32xf32>
    %49 = arith.mulf %41, %48 : vector<16x32xf32>
    %c0_25 = arith.constant 0 : index
    %c0_26 = arith.constant 0 : index
    %50 = vector.load %arg7[%c0_25, %c0_26] : memref<32x128xf32, #tpu.memory_space<vmem>>, vector<32x128xf32>
    %cst_27 = arith.constant dense<0.000000e+00> : vector<16x32xf32>
    %51 = tpu.matmul %8, %49, %cst_27 {dimension_numbers = #tpu.dot_dimension_numbers<[1], [0], [0], [1], [0, 0, 1, 1], [], []>} : vector<16x16xf32>, vector<16x32xf32>, vector<16x32xf32> -> vector<16x32xf32>
    %cst_28 = arith.constant dense<0.000000e+00> : vector<16x128xf32>
    %52 = tpu.matmul %51, %50, %cst_28 {dimension_numbers = #tpu.dot_dimension_numbers<[1], [0], [0], [1], [0, 0, 1, 1], [], []>} : vector<16x32xf32>, vector<32x128xf32>, vector<16x128xf32> -> vector<16x128xf32>
    %53 = vector.broadcast %13 : vector<16x1xf32> to vector<16x128xf32>
    %54 = arith.mulf %52, %53 : vector<16x128xf32>
    %c0_29 = arith.constant 0 : index
    %c0_30 = arith.constant 0 : index
    %55 = vector.load %arg8[%c0_29, %c0_30] : memref<1x128xf32, #tpu.memory_space<vmem>>, vector<1x128xf32>
    %56 = vector.broadcast %55 : vector<1x128xf32> to vector<16x128xf32>
    %57 = arith.addf %54, %56 : vector<16x128xf32>
    %cst_31 = arith.constant 0.000000e+00 : f32
    %58 = vector.broadcast %cst_31 : f32 to vector<16x128xf32>
    %59 = arith.maximumf %57, %58 : vector<16x128xf32>
    %60 = arith.mulf %59, %59 : vector<16x128xf32>
    %cst_32 = arith.constant dense<0.000000e+00> : vector<16xf32>
    %61 = vector.multi_reduction <add>, %60, %cst_32 [1] : vector<16x128xf32> to vector<16xf32>
    %62 = vector.shape_cast %61 : vector<16xf32> to vector<16x1xf32>
    %cst_33 = arith.constant 1.000000e-24 : f32
    %63 = vector.broadcast %cst_33 : f32 to vector<16x1xf32>
    %64 = arith.maximumf %62, %63 : vector<16x1xf32>
    %65 = math.rsqrt %64 : vector<16x1xf32>
    %66 = vector.broadcast %65 : vector<16x1xf32> to vector<16x128xf32>
    %67 = arith.mulf %59, %66 : vector<16x128xf32>
    %c0_34 = arith.constant 0 : index
    %c0_35 = arith.constant 0 : index
    %c0_36 = arith.constant 0 : index
    %68 = vector.load %arg9[%c0_34, %c0_35, %c0_36] : memref<1x16x128xf32, #tpu.memory_space<vmem>>, vector<1x16x128xf32>
    %69 = vector.shape_cast %68 : vector<1x16x128xf32> to vector<16x128xf32>
    %70 = vector.shape_cast %67 : vector<16x128xf32> to vector<1x16x128xf32>
    tpu.vector_store %arg9[%c0_34, %c0_35, %c0_36], %70 {strides = array<i32>} : memref<1x16x128xf32, #tpu.memory_space<vmem>>, vector<1x16x128xf32>,
    return
  }
  func.func @transform_0(%arg0: i32) -> (i32, i32, i32) {
    %c0_i32 = arith.constant 0 : i32
    %c0_i32_0 = arith.constant 0 : i32
    %c0_i32_1 = arith.constant 0 : i32
    return %arg0, %c0_i32, %c0_i32_0 : i32, i32, i32
  }
  func.func @transform_1(%arg0: i32) -> (i32, i32, i32) {
    %c0_i32 = arith.constant 0 : i32
    %c0_i32_0 = arith.constant 0 : i32
    %c0_i32_1 = arith.constant 0 : i32
    return %arg0, %c0_i32, %c0_i32_0 : i32, i32, i32
  }
  func.func @transform_2(%arg0: i32) -> (i32, i32) {
    %c0_i32 = arith.constant 0 : i32
    %c0_i32_0 = arith.constant 0 : i32
    %c0_i32_1 = arith.constant 0 : i32
    return %c0_i32, %c0_i32_0 : i32, i32
  }
  func.func @transform_3(%arg0: i32) -> (i32, i32) {
    %c0_i32 = arith.constant 0 : i32
    %c0_i32_0 = arith.constant 0 : i32
    %c0_i32_1 = arith.constant 0 : i32
    return %c0_i32, %c0_i32_0 : i32, i32
  }
  func.func @transform_4(%arg0: i32) -> (i32, i32) {
    %c0_i32 = arith.constant 0 : i32
    %c0_i32_0 = arith.constant 0 : i32
    %c0_i32_1 = arith.constant 0 : i32
    return %c0_i32, %c0_i32_0 : i32, i32
  }
  func.func @transform_5(%arg0: i32) -> (i32, i32) {
    %c0_i32 = arith.constant 0 : i32
    %c0_i32_0 = arith.constant 0 : i32
    %c0_i32_1 = arith.constant 0 : i32
    return %c0_i32, %c0_i32_0 : i32, i32
  }
  func.func @transform_6(%arg0: i32) -> (i32, i32) {
    %c0_i32 = arith.constant 0 : i32
    %c0_i32_0 = arith.constant 0 : i32
    %c0_i32_1 = arith.constant 0 : i32
    return %c0_i32, %c0_i32_0 : i32, i32
  }
  func.func @transform_7(%arg0: i32) -> (i32, i32) {
    %c0_i32 = arith.constant 0 : i32
    %c0_i32_0 = arith.constant 0 : i32
    %c0_i32_1 = arith.constant 0 : i32
    return %c0_i32, %c0_i32_0 : i32, i32
  }
  func.func @transform_8(%arg0: i32) -> (i32, i32, i32) {
    %c0_i32 = arith.constant 0 : i32
    %c0_i32_0 = arith.constant 0 : i32
    %c0_i32_1 = arith.constant 0 : i32
    return %arg0, %c0_i32, %c0_i32_0 : i32, i32, i32
  }
}

</mosaic_0001>

<llo_original>
// kernel: block_3hop_fused.1
$region0: #{block_3hop_fused.1}
  #allocation0 [shape = 'u32[]', space=smem, size = 0x4, offset = 0x4, fixed_abs, tag = 'smem constant byte address 0x4 - core index']
  #allocation1 [shape = 'u32[144,128]{1,0:T(1,128)}', space=vmem, size = 0x12000, scoped, tag = 'internal scratch']
  %s0 = inlined_call_operand.vmem [shape: f32[2,16,4], index: 0, kind: input, shape index: {}]
  %s1 = inlined_call_operand.vmem [shape: f32[2,16,16], index: 1, kind: input, shape index: {}]
  %s2 = inlined_call_operand.vmem [shape: f32[4,32], index: 2, kind: input, shape index: {}]
  %s3 = inlined_call_operand.vmem [shape: f32[1,32], index: 3, kind: input, shape index: {}]
  %s4 = inlined_call_operand.vmem [shape: f32[32,32], index: 4, kind: input, shape index: {}]
  %s5 = inlined_call_operand.vmem [shape: f32[1,32], index: 5, kind: input, shape index: {}]
  %s6 = inlined_call_operand.vmem [shape: f32[32,128], index: 6, kind: input, shape index: {}]
  %s7 = inlined_call_operand.vmem [shape: f32[1,128], index: 7, kind: input, shape index: {}]
  %s8 = inlined_call_operand.vmem [shape: f32[2,16,128], index: 8, kind: output, shape index: {}]
  %s9 = sld [smem:[#allocation0]]
  $region65: #{block_3hop_fused.1} parent=0
    _
  %s11 = ssub.s32 1, %s9
  %s12 = scalar_select 0, %s11, %s9
  loop: start=0, step=1, limit=4
  $region2: #{block_3hop_fused.1} parent=0 // loop_pre_header
    _
  $region3: #{block_3hop_fused.1} parent=0 // loop_header
    %s14 = sphi 0, %s18
    %p15 = scmp.ge.s32.totalorder %s14, 4
    %s24 = sphi 0, %s26
    %s27 = sphi 0, %s24
    %s28 = sphi 0, %s27
    %s44 = sphi 0, %s28
    %s50 = sphi 0, %s52
    %s53 = sphi 0, %s50
    %s54 = sphi 0, %s53
    %s70 = sphi 0, %s54
    %s74 = sphi 0, %s74
    %s76 = sphi 0, %s74
    %s77 = sphi 0, %s76
    %s91 = sphi 0, %s77
    %s95 = sphi 0, %s95
    %s97 = sphi 0, %s95
    %s98 = sphi 0, %s97
    %s112 = sphi 0, %s98
    %s116 = sphi 0, %s116
    %s118 = sphi 0, %s116
    %s119 = sphi 0, %s118
    %s133 = sphi 0, %s119
    %s137 = sphi 0, %s137
    %s139 = sphi 0, %s137
    %s140 = sphi 0, %s139
    %s154 = sphi 0, %s140
    %s158 = sphi 0, %s158
    %s160 = sphi 0, %s158
    %s161 = sphi 0, %s160
    %s175 = sphi 0, %s161
    %s179 = sphi 0, %s179
    %s181 = sphi 0, %s179
    %s182 = sphi 0, %s181
    %s196 = sphi 0, %s182
    %s202 = sphi 0, %s204
    %s205 = sphi 0, %s202
    %s206 = sphi 0, %s205
    %s222 = sphi 0, %s206
  $region4: #{block_3hop_fused.1} parent=0 // loop_header_branch
    %17 = sbr.rel (%p15) target = $region8
  $region5: #{block_3hop_fused.1} parent=0 // loop_body
    %s19 = ssub.s32 %s14, 1
    %s20 = ssub.s32 %s14, 2
    %s21 = sadd.s32 %s14, 1
    %s22 = ssub.s32 %s14, %s21
    %p23 = scmp.eq.s32.totalorder %s22, 0
    %s25 = sadd.s32 %s24, 1
    %s26 = scalar_select %p23, %s24, %s25
    %p29 = pneg %p23
    %p30 = scmp.eq.s32.totalorder %s14, 1
    %p31 = por %p29, %p30
    %p32 = scmp.ne.s32.totalorder %s24, %s27
    %p33 = scmp.eq.s32.totalorder %s14, 0
    %p34 = por %p32, %p33
    %p35 = scmp.ne.s32.totalorder %s24, %s27
    %p36 = scmp.eq.s32.totalorder %s19, 1
    %p37 = por %p35, %p36
    %p38 = scmp.ne.s32.totalorder %s27, %s28
    %p39 = scmp.eq.s32.totalorder %s19, 0
    %p40 = por %p38, %p39
    %p41 = scmp.ne.s32.totalorder %s27, %s28
    %p42 = scmp.eq.s32.totalorder %s20, 1
    %p43 = por %p41, %p42
    %p45 = scmp.ne.s32.totalorder %s28, %s44
    %p46 = scmp.eq.s32.totalorder %s20, 0
    %p47 = por %p45, %p46
    %s48 = ssub.s32 %s14, %s21
    %p49 = scmp.eq.s32.totalorder %s48, 0
    %s51 = sadd.s32 %s50, 1
    %s52 = scalar_select %p49, %s50, %s51
    %p55 = pneg %p49
    %p56 = scmp.eq.s32.totalorder %s14, 1
    %p57 = por %p55, %p56
    %p58 = scmp.ne.s32.totalorder %s50, %s53
    %p59 = scmp.eq.s32.totalorder %s14, 0
    %p60 = por %p58, %p59
    %p61 = scmp.ne.s32.totalorder %s50, %s53
    %p62 = scmp.eq.s32.totalorder %s19, 1
    %p63 = por %p61, %p62
    %p64 = scmp.ne.s32.totalorder %s53, %s54
    %p65 = scmp.eq.s32.totalorder %s19, 0
    %p66 = por %p64, %p65
    %p67 = scmp.ne.s32.totalorder %s53, %s54
    %p68 = scmp.eq.s32.totalorder %s20, 1
    %p69 = por %p67, %p68
    %p71 = scmp.ne.s32.totalorder %s54, %s70
    %p72 = scmp.eq.s32.totalorder %s20, 0
    %p73 = por %p71, %p72
    %s75 = sadd.s32 %s74, 1
    %p78 = scmp.eq.s32.totalorder %s14, 1
    %p79 = scmp.ne.s32.totalorder %s74, %s76
    %p80 = scmp.eq.s32.totalorder %s14, 0
    %p81 = por %p79, %p80
    %p82 = scmp.ne.s32.totalorder %s74, %s76
    %p83 = scmp.eq.s32.totalorder %s19, 1
    %p84 = por %p82, %p83
    %p85 = scmp.ne.s32.totalorder %s76, %s77
    %p86 = scmp.eq.s32.totalorder %s19, 0
    %p87 = por %p85, %p86
    %p88 = scmp.ne.s32.totalorder %s76, %s77
    %p89 = scmp.eq.s32.totalorder %s20, 1
    %p90 = por %p88, %p89
    %p92 = scmp.ne.s32.totalorder %s77, %s91
    %p93 = scmp.eq.s32.totalorder %s20, 0
    %p94 = por %p92, %p93
    %s96 = sadd.s32 %s95, 1
    %p99 = scmp.eq.s32.totalorder %s14, 1
    %p100 = scmp.ne.s32.totalorder %s95, %s97
    %p101 = scmp.eq.s32.totalorder %s14, 0
    %p102 = por %p100, %p101
    %p103 = scmp.ne.s32.totalorder %s95, %s97
    %p104 = scmp.eq.s32.totalorder %s19, 1
    %p105 = por %p103, %p104
    %p106 = scmp.ne.s32.totalorder %s97, %s98
    %p107 = scmp.eq.s32.totalorder %s19, 0
    %p108 = por %p106, %p107
    %p109 = scmp.ne.s32.totalorder %s97, %s98
    %p110 = scmp.eq.s32.totalorder %s20, 1
    %p111 = por %p109, %p110
    %p113 = scmp.ne.s32.totalorder %s98, %s112
    %p114 = scmp.eq.s32.totalorder %s20, 0
    %p115 = por %p113, %p114
    %s117 = sadd.s32 %s116, 1
    %p120 = scmp.eq.s32.totalorder %s14, 1
    %p121 = scmp.ne.s32.totalorder %s116, %s118
    %p122 = scmp.eq.s32.totalorder %s14, 0
    %p123 = por %p121, %p122
    %p124 = scmp.ne.s32.totalorder %s116, %s118
    %p125 = scmp.eq.s32.totalorder %s19, 1
    %p126 = por %p124, %p125
    %p127 = scmp.ne.s32.totalorder %s118, %s119
    %p128 = scmp.eq.s32.totalorder %s19, 0
    %p129 = por %p127, %p128
    %p130 = scmp.ne.s32.totalorder %s118, %s119
    %p131 = scmp.eq.s32.totalorder %s20, 1
    %p132 = por %p130, %p131
    %p134 = scmp.ne.s32.totalorder %s119, %s133
    %p135 = scmp.eq.s32.totalorder %s20, 0
    %p136 = por %p134, %p135
    %s138 = sadd.s32 %s137, 1
    %p141 = scmp.eq.s32.totalorder %s14, 1
    %p142 = scmp.ne.s32.totalorder %s137, %s139
    %p143 = scmp.eq.s32.totalorder %s14, 0
    %p144 = por %p142, %p143
    %p145 = scmp.ne.s32.totalorder %s137, %s139
    %p146 = scmp.eq.s32.totalorder %s19, 1
    %p147 = por %p145, %p146
    %p148 = scmp.ne.s32.totalorder %s139, %s140
    %p149 = scmp.eq.s32.totalorder %s19, 0
    %p150 = por %p148, %p149
    %p151 = scmp.ne.s32.totalorder %s139, %s140
    %p152 = scmp.eq.s32.totalorder %s20, 1
    %p153 = por %p151, %p152
    %p155 = scmp.ne.s32.totalorder %s140, %s154
    %p156 = scmp.eq.s32.totalorder %s20, 0
    %p157 = por %p155, %p156
    %s159 = sadd.s32 %s158, 1
    %p162 = scmp.eq.s32.totalorder %s14, 1
    %p163 = scmp.ne.s32.totalorder %s158, %s160
    %p164 = scmp.eq.s32.totalorder %s14, 0
    %p165 = por %p163, %p164
    %p166 = scmp.ne.s32.totalorder %s158, %s160
    %p167 = scmp.eq.s32.totalorder %s19, 1
    %p168 = por %p166, %p167
    %p169 = scmp.ne.s32.totalorder %s160, %s161
    %p170 = scmp.eq.s32.totalorder %s19, 0
    %p171 = por %p169, %p170
    %p172 = scmp.ne.s32.totalorder %s160, %s161
    %p173 = scmp.eq.s32.totalorder %s20, 1
    %p174 = por %p172, %p173
    %p176 = scmp.ne.s32.totalorder %s161, %s175
    %p177 = scmp.eq.s32.totalorder %s20, 0
    %p178 = por %p176, %p177
    %s180 = sadd.s32 %s179, 1
    %p183 = scmp.eq.s32.totalorder %s14, 1
    %p184 = scmp.ne.s32.totalorder %s179, %s181
    %p185 = scmp.eq.s32.totalorder %s14, 0
    %p186 = por %p184, %p185
    %p187 = scmp.ne.s32.totalorder %s179, %s181
    %p188 = scmp.eq.s32.totalorder %s19, 1
    %p189 = por %p187, %p188
    %p190 = scmp.ne.s32.totalorder %s181, %s182
    %p191 = scmp.eq.s32.totalorder %s19, 0
    %p192 = por %p190, %p191
    %p193 = scmp.ne.s32.totalorder %s181, %s182
    %p194 = scmp.eq.s32.totalorder %s20, 1
    %p195 = por %p193, %p194
    %p197 = scmp.ne.s32.totalorder %s182, %s196
    %p198 = scmp.eq.s32.totalorder %s20, 0
    %p199 = por %p197, %p198
    %s200 = ssub.s32 %s14, %s21
    %p201 = scmp.eq.s32.totalorder %s200, 0
    %s203 = sadd.s32 %s202, 1
    %s204 = scalar_select %p201, %s202, %s203
    %p207 = pneg %p201
    %p208 = scmp.eq.s32.totalorder %s14, 1
    %p209 = por %p207, %p208
    %p210 = scmp.ne.s32.totalorder %s202, %s205
    %p211 = scmp.eq.s32.totalorder %s14, 0
    %p212 = por %p210, %p211
    %p213 = scmp.ne.s32.totalorder %s202, %s205
    %p214 = scmp.eq.s32.totalorder %s19, 1
    %p215 = por %p213, %p214
    %p216 = scmp.ne.s32.totalorder %s205, %s206
    %p217 = scmp.eq.s32.totalorder %s19, 0
    %p218 = por %p216, %p217
    %p219 = scmp.ne.s32.totalorder %s205, %s206
    %p220 = scmp.eq.s32.totalorder %s20, 1
    %p221 = por %p219, %p220
    %p223 = scmp.ne.s32.totalorder %s206, %s222
    %p224 = scmp.eq.s32.totalorder %s20, 0
    %p225 = por %p223, %p224
    %p226 = scmp.le.s32.totalorder 1, %s14
    %p227 = scmp.lt.s32.totalorder %s14, 3
    %p228 = pnand %p226, %p227
    %p229 = pneg %p228
    // Predicated region
    $region9: #{block_3hop_fused.1} parent=5 // pred_check
      _
    $region10: #{block_3hop_fused.1} parent=5 // pred_check_branch
      %231 = sbr.rel (%p228) target = $region12
    $region11: #{block_3hop_fused.1} parent=5 // pred_region
      %s232 = ssub.s32 %s14, 1
      // Predicated region
      $region13: #{block_3hop_fused.1} parent=11 // pred_check
        %p233 = pneg %p87
      $region14: #{block_3hop_fused.1} parent=11 // pred_check_branch
        %235 = sbr.rel (%p233) target = $region16
      $region15: #{block_3hop_fused.1} parent=11 // pred_region
        _
      $region16: #{block_3hop_fused.1} parent=11 // pred_fallthru
        _
      // Predicated region
      $region17: #{block_3hop_fused.1} parent=11 // pred_check
        %p236 = pneg %p108
      $region18: #{block_3hop_fused.1} parent=11 // pred_check_branch
        %238 = sbr.rel (%p236) target = $region20
      $region19: #{block_3hop_fused.1} parent=11 // pred_region
        _
      $region20: #{block_3hop_fused.1} parent=11 // pred_fallthru
        _
      // Predicated region
      $region21: #{block_3hop_fused.1} parent=11 // pred_check
        %p239 = pneg %p129
      $region22: #{block_3hop_fused.1} parent=11 // pred_check_branch
        %241 = sbr.rel (%p239) target = $region24
      $region23: #{block_3hop_fused.1} parent=11 // pred_region
        _
      $region24: #{block_3hop_fused.1} parent=11 // pred_fallthru
        _
      // Predicated region
      $region25: #{block_3hop_fused.1} parent=11 // pred_check
        %p242 = pneg %p150
      $region26: #{block_3hop_fused.1} parent=11 // pred_check_branch
        %244 = sbr.rel (%p242) target = $region28
      $region27: #{block_3hop_fused.1} parent=11 // pred_region
        _
      $region28: #{block_3hop_fused.1} parent=11 // pred_fallthru
        _
      // Predicated region
      $region29: #{block_3hop_fused.1} parent=11 // pred_check
        %p245 = pneg %p171
      $region30: #{block_3hop_fused.1} parent=11 // pred_check_branch
        %247 = sbr.rel (%p245) target = $region32
      $region31: #{block_3hop_fused.1} parent=11 // pred_region
        _
      $region32: #{block_3hop_fused.1} parent=11 // pred_fallthru
        _
      // Predicated region
      $region33: #{block_3hop_fused.1} parent=11 // pred_check
        %p248 = pneg %p192
      $region34: #{block_3hop_fused.1} parent=11 // pred_check_branch
        %250 = sbr.rel (%p248) target = $region36
      $region35: #{block_3hop_fused.1} parent=11 // pred_region
        _
      $region36: #{block_3hop_fused.1} parent=11 // pred_fallthru
        _
    $region12: #{block_3hop_fused.1} parent=5 // pred_fallthru
      _
    %p251 = scmp.lt.s32.totalorder %s14, 2
    // Predicated region
    $region37: #{block_3hop_fused.1} parent=5 // pred_check
      %p252 = pneg %p251
    $region38: #{block_3hop_fused.1} parent=5 // pred_check_branch
      %254 = sbr.rel (%p252) target = $region40
    $region39: #{block_3hop_fused.1} parent=5 // pred_region
      // Predicated region
      $region41: #{block_3hop_fused.1} parent=39 // pred_check
        %p255 = pneg %p34
      $region42: #{block_3hop_fused.1} parent=39 // pred_check_branch
        %257 = sbr.rel (%p255) target = $region44
      $region43: #{block_3hop_fused.1} parent=39 // pred_region
        %p258 = scmp.lt.s32.totalorder %s14, 1
        %s259 = scalar_select %p258, %s14, 1
        %s260 = smul.addr %s259, 2
        %s261 = smul.addr %s260, 8
        %s262 = scalar_lea.vmem %s0, %s261
      $region44: #{block_3hop_fused.1} parent=39 // pred_fallthru
        _
      // Predicated region
      $region45: #{block_3hop_fused.1} parent=39 // pred_check
        %p263 = pneg %p60
      $region46: #{block_3hop_fused.1} parent=39 // pred_check_branch
        %265 = sbr.rel (%p263) target = $region48
      $region47: #{block_3hop_fused.1} parent=39 // pred_region
        %p266 = scmp.lt.s32.totalorder %s14, 1
        %s267 = scalar_select %p266, %s14, 1
        %s268 = smul.addr %s267, 2
        %s269 = smul.addr %s268, 8
        %s270 = scalar_lea.vmem %s1, %s269
      $region48: #{block_3hop_fused.1} parent=39 // pred_fallthru
        _
    $region40: #{block_3hop_fused.1} parent=5 // pred_fallthru
      _
    %p271 = scmp.le.s32.totalorder 1, %s14
    %p272 = scmp.lt.s32.totalorder %s14, 3
    %p273 = pnand %p271, %p272
    %p274 = pneg %p273
    // Predicated region
    $region49: #{block_3hop_fused.1} parent=5 // pred_check
      _
    $region50: #{block_3hop_fused.1} parent=5 // pred_check_branch
      %276 = sbr.rel (%p273) target = $region52
    $region51: #{block_3hop_fused.1} parent=5 // pred_region
      %s277 = ssub.s32 %s14, 1
      %p278 = scmp.lt.s32.totalorder %s19, 1
      %s279 = scalar_select %p278, %s19, 1
      %s280 = smul.addr %s279, 2
      %s281 = smul.addr %s280, 8
      %s282 = scalar_lea.vmem %s0, %s281
      %p283 = pneg %p40
      %p284 = pneg %p37
      %p285 = scmp.lt.s32.totalorder %s19, 1
      %s286 = scalar_select %p285, %s19, 1
      %s287 = smul.addr %s286, 2
      %s288 = smul.addr %s287, 8
      %s289 = scalar_lea.vmem %s1, %s288
      %p290 = pneg %p66
      %p291 = pneg %p63
      %p292 = pneg %p87
      %p293 = pneg %p84
      %p294 = pneg %p108
      %p295 = pneg %p105
      %p296 = pneg %p129
      %p297 = pneg %p126
      %p298 = pneg %p150
      %p299 = pneg %p147
      %p300 = pneg %p171
      %p301 = pneg %p168
      %p302 = pneg %p192
      %p303 = pneg %p189
      %p304 = pneg %p218
      %p305 = pneg %p215
      %p306 = scmp.lt.s32.totalorder %s19, 1
      %s307 = scalar_select %p306, %s19, 1
      %s308 = smul.addr %s307, 2
      %s309 = smul.addr %s308, 8
      %s310 = scalar_lea.vmem %s8, %s309
      %p311 = scmp.lt.s32.totalorder %s19, 1
      %s312 = scalar_select %p311, %s19, 1
      %s313 = smul.addr %s312, 2
      %s314 = smul.addr %s313, 8
      %s315 = scalar_lea.vmem %s0, %s314
      %p316 = scmp.lt.s32.totalorder %s19, 1
      %s317 = scalar_select %p316, %s19, 1
      %s318 = smul.addr %s317, 2
      %s319 = smul.addr %s318, 8
      %s320 = scalar_lea.vmem %s1, %s319
      %p321 = scmp.lt.s32.totalorder %s19, 1
      %s322 = scalar_select %p321, %s19, 1
      %s323 = smul.addr %s322, 2
      %s324 = smul.addr %s323, 8
      %s325 = scalar_lea.vmem %s8, %s324
      %v326 = vld [vmem:[%s315] sm:$0xff]
      %v327 = vld [vmem:[%s315 + $0x8] sm:$0xff]
      %v328 = vld [vmem:[%s320] sm:$0xff]
      %v329 = vld [vmem:[%s320 + $0x8] sm:$0xff]
      %v330 = vlaneseq
      %v331 = vshrl.u32 %v330, 7
      %v332 = vadd.s32 %v331, 8
      %v333 = vlaneseq
      %v334 = vand.u32 %v333, 127
      %vm335 = vcmp.eq.s32.totalorder %v331, %v334
      %vm336 = vcmp.eq.s32.totalorder %v332, %v334
      %v337 = vsel %vm335, 1.0, %v328
      %v338 = vsel %vm336, 1.0, %v329
      %vm339 = vcmask 130048
      %v340 = vsel %vm339, %v337, 0.0
      %341 = vadd.xlane.f32.xlu0 %v340
      %v342 = vpop.xlane.xlu0 %341
      %v343 = vsel %vm339, %v338, 0.0
      %344 = vadd.xlane.f32.xlu0 %v343
      %v345 = vpop.xlane.xlu0 %344
      %v346 = vmax.f32 %v342, 1.0
      %v347 = vmax.f32 %v345, 1.0
      %v348 = vrcp.pop %v346
      %v349 = vrcp.pop %v347
      %v350 = vld [vmem:[%s2] sm:$0xf]
      %v352 = vsel %vm339, %v337, 0
      %v355 = vsel %vm339, %v338, 0
      %357 = vmatprep.subr.mxu0 0.0
      %358 = vmatpush1.msra.mxu0 %v326
      %359 = vmatprep.subr.mxu0 0.0
      %360 = vmatpush1.msra.mxu0 %v327
      %361 = vmatprep.subr.mxu0 0.0
      %362 = vmatpush1.msra.mxu0 0.0
      %363 = vmatprep.subr.mxu0 0.0
      %364 = vmatpush1.msra.mxu0 0.0
      %365 = vmatprep.subr.mxu0 0.0
      %366 = vmatpush1.msra.mxu0 0.0
      %367 = vmatprep.subr.mxu0 0.0
      %368 = vmatpush1.msra.mxu0 0.0
      %369 = vmatprep.subr.mxu0 0.0
      %370 = vmatpush1.msra.mxu0 0.0
      %371 = vmatprep.subr.mxu0 0.0
      %372 = vmatpush1.msra.mxu0 0.0
      %373 = vmatprep.subr.mxu0 0.0
      %374 = vmatpush1.msra.mxu0 0.0
      %375 = vmatprep.subr.mxu0 0.0
      %376 = vmatpush1.msra.mxu0 0.0
      %377 = vmatprep.subr.mxu0 0.0
      %378 = vmatpush1.msra.mxu0 0.0
      %379 = vmatprep.subr.mxu0 0.0
      %380 = vmatpush1.msra.mxu0 0.0
      %381 = vmatprep.subr.mxu0 0.0
      %382 = vmatpush1.msra.mxu0 0.0
      %383 = vmatprep.subr.mxu0 0.0
      %384 = vmatpush1.msra.mxu0 0.0
      %385 = vmatprep.subr.mxu0 0.0
      %386 = vmatpush1.msra.mxu0 0.0
      %387 = vmatprep.subr.mxu0 0.0
      %388 = vmatpush1.msra.mxu0 0.0
      %389 = vmatprep.subr.mxu0 0.0
      %390 = vmatpush1.msra.mxu0 0.0
      %391 = vmatprep.subr.mxu0 0.0
      %392 = vmatpush1.msra.mxu0 0.0
      %393 = vmatprep.subr.mxu0 0.0
      %394 = vmatpush1.msra.mxu0 0.0
      %395 = vmatprep.subr.mxu0 0.0
      %396 = vmatpush1.msra.mxu0 0.0
      %397 = vmatprep.subr.mxu0 0.0
      %398 = vmatpush1.msra.mxu0 0.0
      %399 = vmatprep.subr.mxu0 0.0
      %400 = vmatpush1.msra.mxu0 0.0
      %401 = vmatprep.subr.mxu0 0.0
      %402 = vmatpush1.msra.mxu0 0.0
      %403 = vmatprep.subr.mxu0 0.0
      %404 = vmatpush1.msra.mxu0 0.0
      %405 = vmatprep.subr.mxu0 0.0
      %406 = vmatpush1.msra.mxu0 0.0
      %407 = vmatprep.subr.mxu0 0.0
      %408 = vmatpush1.msra.mxu0 0.0
      %409 = vmatprep.subr.mxu0 0.0
      %410 = vmatpush1.msra.mxu0 0.0
      %411 = vmatprep.subr.mxu0 0.0
      %412 = vmatpush1.msra.mxu0 0.0
      %413 = vmatprep.subr.mxu0 0.0
      %414 = vmatpush1.msra.mxu0 0.0
      %415 = vmatprep.subr.mxu0 0.0
      %416 = vmatpush1.msra.mxu0 0.0
      %417 = vmatprep.subr.mxu0 0.0
      %418 = vmatpush1.msra.mxu0 0.0
      %419 = vmatprep.subr.mxu0 0.0
      %420 = vmatpush1.msra.mxu0 0.0
      %421 = vmatprep.mubr.f32.mxu0 0.0
      %422 = vmatmul.mubr.f32.gmra.mrb[0].mxu0 %v352
      %v423 = vpop.f32.mrb[0].mxu0
      %v424 = vadd.f32 0.0, %v423
      %v425 = vpop.f32.mrb[0].mxu0
      %426 = vmatprep.mubr.f32.mxu0 0.0
      %427 = vmatmul.mubr.f32.gmra.mrb[0].mxu0 %v355
      %v428 = vpop.f32.mrb[0].mxu0
      %v429 = vadd.f32 0.0, %v428
      %v430 = vpop.f32.mrb[0].mxu0
      %431 = vdwg.mxu0
      %vm432 = vcmask 31744
      %v434 = vsel %vm432, %v424, 0
      %v437 = vsel %vm432, %v429, 0
      %vm439 = vcmask 1043456
      %v441 = vsel %vm439, %v350, 0
      %443 = vmatprep.subr.mxu0 0.0
      %444 = vmatpush1.msra.mxu0 %v441
      %445 = vmatprep.subr.mxu0 0.0
      %446 = vmatpush1.msra.mxu0 0.0
      %447 = vmatprep.subr.mxu0 0.0
      %448 = vmatpush1.msra.mxu0 0.0
      %449 = vmatprep.subr.mxu0 0.0
      %450 = vmatpush1.msra.mxu0 0.0
      %451 = vmatprep.subr.mxu0 0.0
      %452 = vmatpush1.msra.mxu0 0.0
      %453 = vmatprep.subr.mxu0 0.0
      %454 = vmatpush1.msra.mxu0 0.0
      %455 = vmatprep.subr.mxu0 0.0
      %456 = vmatpush1.msra.mxu0 0.0
      %457 = vmatprep.subr.mxu0 0.0
      %458 = vmatpush1.msra.mxu0 0.0
      %459 = vmatprep.subr.mxu0 0.0
      %460 = vmatpush1.msra.mxu0 0.0
      %461 = vmatprep.subr.mxu0 0.0
      %462 = vmatpush1.msra.mxu0 0.0
      %463 = vmatprep.subr.mxu0 0.0
      %464 = vmatpush1.msra.mxu0 0.0
      %465 = vmatprep.subr.mxu0 0.0
      %466 = vmatpush1.msra.mxu0 0.0
      %467 = vmatprep.subr.mxu0 0.0
      %468 = vmatpush1.msra.mxu0 0.0
      %469 = vmatprep.subr.mxu0 0.0
      %470 = vmatpush1.msra.mxu0 0.0
      %471 = vmatprep.subr.mxu0 0.0
      %472 = vmatpush1.msra.mxu0 0.0
      %473 = vmatprep.subr.mxu0 0.0
      %474 = vmatpush1.msra.mxu0 0.0
      %475 = vmatprep.subr.mxu0 0.0
      %476 = vmatpush1.msra.mxu0 0.0
      %477 = vmatprep.subr.mxu0 0.0
      %478 = vmatpush1.msra.mxu0 0.0
      %479 = vmatprep.subr.mxu0 0.0
      %480 = vmatpush1.msra.mxu0 0.0
      %481 = vmatprep.subr.mxu0 0.0
      %482 = vmatpush1.msra.mxu0 0.0
      %483 = vmatprep.subr.mxu0 0.0
      %484 = vmatpush1.msra.mxu0 0.0
      %485 = vmatprep.subr.mxu0 0.0
      %486 = vmatpush1.msra.mxu0 0.0
      %487 = vmatprep.subr.mxu0 0.0
      %488 = vmatpush1.msra.mxu0 0.0
      %489 = vmatprep.subr.mxu0 0.0
      %490 = vmatpush1.msra.mxu0 0.0
      %491 = vmatprep.subr.mxu0 0.0
      %492 = vmatpush1.msra.mxu0 0.0
      %493 = vmatprep.subr.mxu0 0.0
      %494 = vmatpush1.msra.mxu0 0.0
      %495 = vmatprep.subr.mxu0 0.0
      %496 = vmatpush1.msra.mxu0 0.0
      %497 = vmatprep.subr.mxu0 0.0
      %498 = vmatpush1.msra.mxu0 0.0
      %499 = vmatprep.subr.mxu0 0.0
      %500 = vmatpush1.msra.mxu0 0.0
      %501 = vmatprep.subr.mxu0 0.0
      %502 = vmatpush1.msra.mxu0 0.0
      %503 = vmatprep.subr.mxu0 0.0
      %504 = vmatpush1.msra.mxu0 0.0
      %505 = vmatprep.subr.mxu0 0.0
      %506 = vmatpush1.msra.mxu0 0.0
      %507 = vmatprep.mubr.f32.mxu0 0.0
      %508 = vmatmul.mubr.f32.gmra.mrb[0].mxu0 %v434
      %v509 = vpop.f32.mrb[0].mxu0
      %v510 = vadd.f32 0.0, %v509
      %v511 = vpop.f32.mrb[0].mxu0
      %512 = vmatprep.mubr.f32.mxu0 0.0
      %513 = vmatmul.mubr.f32.gmra.mrb[0].mxu0 %v437
      %v514 = vpop.f32.mrb[0].mxu0
      %v515 = vadd.f32 0.0, %v514
      %v516 = vpop.f32.mrb[0].mxu0
      %517 = vdwg.mxu0
      %v518 = vmul.f32 %v510, %v348
      %v519 = vmul.f32 %v515, %v349
      %v520 = vld [vmem:[%s3] sm:$0x1]
      %v522 = vlaneseq
      %v523 = vshrl.u32 %v522, 7
      %v524 = vsub.s32 0, %v523
      %v525 = vrot.slane %v520, %v524
      %v527 = vadd.f32 %v518, %v525
      %v528 = vadd.f32 %v519, %v525
      %v529 = vmax.f32 %v527, 0.0
      %v530 = vmax.f32 %v528, 0.0
      %v531 = vmul.f32 %v529, %v529
      %v532 = vmul.f32 %v530, %v530
      %vm533 = vcmask 261120
      %v534 = vsel %vm533, %v531, 0.0
      %535 = vadd.xlane.f32.xlu0 %v534
      %v536 = vpop.xlane.xlu0 %535
      %v537 = vsel %vm533, %v532, 0.0
      %538 = vadd.xlane.f32.xlu0 %v537
      %v539 = vpop.xlane.xlu0 %538
      %v540 = vmax.f32 %v536, 1e-24
      %v541 = vmax.f32 %v539, 1e-24
      %v542 = vrsqrt.pop %v540
      %v543 = vrsqrt.pop %v541
      %v544 = vmul.f32 %v529, %v542
      %v545 = vmul.f32 %v530, %v543
      %v546 = vld [vmem:[%s4] sm:$0xff]
      %v547 = vld [vmem:[%s4 + $0x8] sm:$0xff]
      %v548 = vld [vmem:[%s4 + $0x10] sm:$0xff]
      %v549 = vld [vmem:[%s4 + $0x18] sm:$0xff]
      %550 = vmatprep.subr.mxu0 0.0
      %551 = vmatpush1.msra.mxu0 %v544
      %552 = vmatprep.subr.mxu0 0.0
      %553 = vmatpush1.msra.mxu0 %v545
      %554 = vmatprep.subr.mxu0 0.0
      %555 = vmatpush1.msra.mxu0 0.0
      %556 = vmatprep.subr.mxu0 0.0
      %557 = vmatpush1.msra.mxu0 0.0
      %558 = vmatprep.subr.mxu0 0.0
      %559 = vmatpush1.msra.mxu0 0.0
      %560 = vmatprep.subr.mxu0 0.0
      %561 = vmatpush1.msra.mxu0 0.0
      %562 = vmatprep.subr.mxu0 0.0
      %563 = vmatpush1.msra.mxu0 0.0
      %564 = vmatprep.subr.mxu0 0.0
      %565 = vmatpush1.msra.mxu0 0.0
      %566 = vmatprep.subr.mxu0 0.0
      %567 = vmatpush1.msra.mxu0 0.0
      %568 = vmatprep.subr.mxu0 0.0
      %569 = vmatpush1.msra.mxu0 0.0
      %570 = vmatprep.subr.mxu0 0.0
      %571 = vmatpush1.msra.mxu0 0.0
      %572 = vmatprep.subr.mxu0 0.0
      %573 = vmatpush1.msra.mxu0 0.0
      %574 = vmatprep.subr.mxu0 0.0
      %575 = vmatpush1.msra.mxu0 0.0
      %576 = vmatprep.subr.mxu0 0.0
      %577 = vmatpush1.msra.mxu0 0.0
      %578 = vmatprep.subr.mxu0 0.0
      %579 = vmatpush1.msra.mxu0 0.0
      %580 = vmatprep.subr.mxu0 0.0
      %581 = vmatpush1.msra.mxu0 0.0
      %582 = vmatprep.subr.mxu0 0.0
      %583 = vmatpush1.msra.mxu0 0.0
      %584 = vmatprep.subr.mxu0 0.0
      %585 = vmatpush1.msra.mxu0 0.0
      %586 = vmatprep.subr.mxu0 0.0
      %587 = vmatpush1.msra.mxu0 0.0
      %588 = vmatprep.subr.mxu0 0.0
      %589 = vmatpush1.msra.mxu0 0.0
      %590 = vmatprep.subr.mxu0 0.0
      %591 = vmatpush1.msra.mxu0 0.0
      %592 = vmatprep.subr.mxu0 0.0
      %593 = vmatpush1.msra.mxu0 0.0
      %594 = vmatprep.subr.mxu0 0.0
      %595 = vmatpush1.msra.mxu0 0.0
      %596 = vmatprep.subr.mxu0 0.0
      %597 = vmatpush1.msra.mxu0 0.0
      %598 = vmatprep.subr.mxu0 0.0
      %599 = vmatpush1.msra.mxu0 0.0
      %600 = vmatprep.subr.mxu0 0.0
      %601 = vmatpush1.msra.mxu0 0.0
      %602 = vmatprep.subr.mxu0 0.0
      %603 = vmatpush1.msra.mxu0 0.0
      %604 = vmatprep.subr.mxu0 0.0
      %605 = vmatpush1.msra.mxu0 0.0
      %606 = vmatprep.subr.mxu0 0.0
      %607 = vmatpush1.msra.mxu0 0.0
      %608 = vmatprep.subr.mxu0 0.0
      %609 = vmatpush1.msra.mxu0 0.0
      %610 = vmatprep.subr.mxu0 0.0
      %611 = vmatpush1.msra.mxu0 0.0
      %612 = vmatprep.subr.mxu0 0.0
      %613 = vmatpush1.msra.mxu0 0.0
      %614 = vmatprep.mubr.f32.mxu0 0.0
      %615 = vmatmul.mubr.f32.gmra.mrb[0].mxu0 %v352
      %v616 = vpop.f32.mrb[0].mxu0
      %v617 = vadd.f32 0.0, %v616
      %v618 = vpop.f32.mrb[0].mxu0
      %619 = vmatprep.mubr.f32.mxu0 0.0
      %620 = vmatmul.mubr.f32.gmra.mrb[0].mxu0 %v355
      %v621 = vpop.f32.mrb[0].mxu0
      %v622 = vadd.f32 0.0, %v621
      %v623 = vpop.f32.mrb[0].mxu0
      %624 = vdwg.mxu0
      %v626 = vsel %vm533, %v617, 0
      %v629 = vsel %vm533, %v622, 0
      %631 = vmatprep.subr.mxu0 0.0
      %632 = vmatpush1.msra.mxu0 %v546
      %633 = vmatprep.subr.mxu0 0.0
      %634 = vmatpush1.msra.mxu0 %v547
      %635 = vmatprep.subr.mxu0 0.0
      %636 = vmatpush1.msra.mxu0 %v548
      %637 = vmatprep.subr.mxu0 0.0
      %638 = vmatpush1.msra.mxu0 %v549
      %639 = vmatprep.subr.mxu0 0.0
      %640 = vmatpush1.msra.mxu0 0.0
      %641 = vmatprep.subr.mxu0 0.0
      %642 = vmatpush1.msra.mxu0 0.0
      %643 = vmatprep.subr.mxu0 0.0
      %644 = vmatpush1.msra.mxu0 0.0
      %645 = vmatprep.subr.mxu0 0.0
      %646 = vmatpush1.msra.mxu0 0.0
      %647 = vmatprep.subr.mxu0 0.0
      %648 = vmatpush1.msra.mxu0 0.0
      %649 = vmatprep.subr.mxu0 0.0
      %650 = vmatpush1.msra.mxu0 0.0
      %651 = vmatprep.subr.mxu0 0.0
      %652 = vmatpush1.msra.mxu0 0.0
      %653 = vmatprep.subr.mxu0 0.0
      %654 = vmatpush1.msra.mxu0 0.0
      %655 = vmatprep.subr.mxu0 0.0
      %656 = vmatpush1.msra.mxu0 0.0
      %657 = vmatprep.subr.mxu0 0.0
      %658 = vmatpush1.msra.mxu0 0.0
      %659 = vmatprep.subr.mxu0 0.0
      %660 = vmatpush1.msra.mxu0 0.0
      %661 = vmatprep.subr.mxu0 0.0
      %662 = vmatpush1.msra.mxu0 0.0
      %663 = vmatprep.subr.mxu0 0.0
      %664 = vmatpush1.msra.mxu0 0.0
      %665 = vmatprep.subr.mxu0 0.0
      %666 = vmatpush1.msra.mxu0 0.0
      %667 = vmatprep.subr.mxu0 0.0
      %668 = vmatpush1.msra.mxu0 0.0
      %669 = vmatprep.subr.mxu0 0.0
      %670 = vmatpush1.msra.mxu0 0.0
      %671 = vmatprep.subr.mxu0 0.0
      %672 = vmatpush1.msra.mxu0 0.0
      %673 = vmatprep.subr.mxu0 0.0
      %674 = vmatpush1.msra.mxu0 0.0
      %675 = vmatprep.subr.mxu0 0.0
      %676 = vmatpush1.msra.mxu0 0.0
      %677 = vmatprep.subr.mxu0 0.0
      %678 = vmatpush1.msra.mxu0 0.0
      %679 = vmatprep.subr.mxu0 0.0
      %680 = vmatpush1.msra.mxu0 0.0
      %681 = vmatprep.subr.mxu0 0.0
      %682 = vmatpush1.msra.mxu0 0.0
      %683 = vmatprep.subr.mxu0 0.0
      %684 = vmatpush1.msra.mxu0 0.0
      %685 = vmatprep.subr.mxu0 0.0
      %686 = vmatpush1.msra.mxu0 0.0
      %687 = vmatprep.subr.mxu0 0.0
      %688 = vmatpush1.msra.mxu0 0.0
      %689 = vmatprep.subr.mxu0 0.0
      %690 = vmatpush1.msra.mxu0 0.0
      %691 = vmatprep.subr.mxu0 0.0
      %692 = vmatpush1.msra.mxu0 0.0
      %693 = vmatprep.subr.mxu0 0.0
      %694 = vmatpush1.msra.mxu0 0.0
      %695 = vmatprep.mubr.f32.mxu0 0.0
      %696 = vmatmul.mubr.f32.gmra.mrb[0].mxu0 %v626
      %v697 = vpop.f32.mrb[0].mxu0
      %v698 = vadd.f32 0.0, %v697
      %v699 = vpop.f32.mrb[0].mxu0
      %700 = vmatprep.mubr.f32.mxu0 0.0
      %701 = vmatmul.mubr.f32.gmra.mrb[0].mxu0 %v629
      %v702 = vpop.f32.mrb[0].mxu0
      %v703 = vadd.f32 0.0, %v702
      %v704 = vpop.f32.mrb[0].mxu0
      %705 = vdwg.mxu0
      %v706 = vmul.f32 %v698, %v348
      %v707 = vmul.f32 %v703, %v349
      %v708 = vld [vmem:[%s5] sm:$0x1]
      %v710 = vlaneseq
      %v711 = vshrl.u32 %v710, 7
      %v712 = vsub.s32 0, %v711
      %v713 = vrot.slane %v708, %v712
      %v715 = vadd.f32 %v706, %v713
      %v716 = vadd.f32 %v707, %v713
      %v717 = vmax.f32 %v715, 0.0
      %v718 = vmax.f32 %v716, 0.0
      %v719 = vmul.f32 %v717, %v717
      %v720 = vmul.f32 %v718, %v718
      %v721 = vsel %vm533, %v719, 0.0
      %722 = vadd.xlane.f32.xlu0 %v721
      %v723 = vpop.xlane.xlu0 %722
      %v724 = vsel %vm533, %v720, 0.0
      %725 = vadd.xlane.f32.xlu0 %v724
      %v726 = vpop.xlane.xlu0 %725
      %v727 = vmax.f32 %v723, 1e-24
      %v728 = vmax.f32 %v726, 1e-24
      %v729 = vrsqrt.pop %v727
      %v730 = vrsqrt.pop %v728
      %v731 = vmul.f32 %v717, %v729
      %v732 = vmul.f32 %v718, %v730
      %v733 = vld [vmem:[%s6] sm:$0xff]
      %v734 = vld [vmem:[%s6 + $0x8] sm:$0xff]
      %v735 = vld [vmem:[%s6 + $0x10] sm:$0xff]
      %v736 = vld [vmem:[%s6 + $0x18] sm:$0xff]
      %737 = vmatprep.subr.mxu0 0.0
      %738 = vmatpush1.msra.mxu0 %v731
      %739 = vmatprep.subr.mxu0 0.0
      %740 = vmatpush1.msra.mxu0 %v732
      %741 = vmatprep.subr.mxu0 0.0
      %742 = vmatpush1.msra.mxu0 0.0
      %743 = vmatprep.subr.mxu0 0.0
      %744 = vmatpush1.msra.mxu0 0.0
      %745 = vmatprep.subr.mxu0 0.0
      %746 = vmatpush1.msra.mxu0 0.0
      %747 = vmatprep.subr.mxu0 0.0
      %748 = vmatpush1.msra.mxu0 0.0
      %749 = vmatprep.subr.mxu0 0.0
      %750 = vmatpush1.msra.mxu0 0.0
      %751 = vmatprep.subr.mxu0 0.0
      %752 = vmatpush1.msra.mxu0 0.0
      %753 = vmatprep.subr.mxu0 0.0
      %754 = vmatpush1.msra.mxu0 0.0
      %755 = vmatprep.subr.mxu0 0.0
      %756 = vmatpush1.msra.mxu0 0.0
      %757 = vmatprep.subr.mxu0 0.0
      %758 = vmatpush1.msra.mxu0 0.0
      %759 = vmatprep.subr.mxu0 0.0
      %760 = vmatpush1.msra.mxu0 0.0
      %761 = vmatprep.subr.mxu0 0.0
      %762 = vmatpush1.msra.mxu0 0.0
      %763 = vmatprep.subr.mxu0 0.0
      %764 = vmatpush1.msra.mxu0 0.0
      %765 = vmatprep.subr.mxu0 0.0
      %766 = vmatpush1.msra.mxu0 0.0
      %767 = vmatprep.subr.mxu0 0.0
      %768 = vmatpush1.msra.mxu0 0.0
      %769 = vmatprep.subr.mxu0 0.0
      %770 = vmatpush1.msra.mxu0 0.0
      %771 = vmatprep.subr.mxu0 0.0
      %772 = vmatpush1.msra.mxu0 0.0
      %773 = vmatprep.subr.mxu0 0.0
      %774 = vmatpush1.msra.mxu0 0.0
      %775 = vmatprep.subr.mxu0 0.0
      %776 = vmatpush1.msra.mxu0 0.0
      %777 = vmatprep.subr.mxu0 0.0
      %778 = vmatpush1.msra.mxu0 0.0
      %779 = vmatprep.subr.mxu0 0.0
      %780 = vmatpush1.msra.mxu0 0.0
      %781 = vmatprep.subr.mxu0 0.0
      %782 = vmatpush1.msra.mxu0 0.0
      %783 = vmatprep.subr.mxu0 0.0
      %784 = vmatpush1.msra.mxu0 0.0
      %785 = vmatprep.subr.mxu0 0.0
      %786 = vmatpush1.msra.mxu0 0.0
      %787 = vmatprep.subr.mxu0 0.0
      %788 = vmatpush1.msra.mxu0 0.0
      %789 = vmatprep.subr.mxu0 0.0
      %790 = vmatpush1.msra.mxu0 0.0
      %791 = vmatprep.subr.mxu0 0.0
      %792 = vmatpush1.msra.mxu0 0.0
      %793 = vmatprep.subr.mxu0 0.0
      %794 = vmatpush1.msra.mxu0 0.0
      %795 = vmatprep.subr.mxu0 0.0
      %796 = vmatpush1.msra.mxu0 0.0
      %797 = vmatprep.subr.mxu0 0.0
      %798 = vmatpush1.msra.mxu0 0.0
      %799 = vmatprep.subr.mxu0 0.0
      %800 = vmatpush1.msra.mxu0 0.0
      %801 = vmatprep.mubr.f32.mxu0 0.0
      %802 = vmatmul.mubr.f32.gmra.mrb[0].mxu0 %v352
      %v803 = vpop.f32.mrb[0].mxu0
      %v804 = vadd.f32 0.0, %v803
      %v805 = vpop.f32.mrb[0].mxu0
      %806 = vmatprep.mubr.f32.mxu0 0.0
      %807 = vmatmul.mubr.f32.gmra.mrb[0].mxu0 %v355
      %v808 = vpop.f32.mrb[0].mxu0
      %v809 = vadd.f32 0.0, %v808
      %v810 = vpop.f32.mrb[0].mxu0
      %811 = vdwg.mxu0
      %v813 = vsel %vm533, %v804, 0
      %v816 = vsel %vm533, %v809, 0
      %818 = vmatprep.subr.mxu0 0.0
      %819 = vmatpush1.msra.mxu0 %v733
      %820 = vmatprep.subr.mxu0 0.0
      %821 = vmatpush1.msra.mxu0 %v734
      %822 = vmatprep.subr.mxu0 0.0
      %823 = vmatpush1.msra.mxu0 %v735
      %824 = vmatprep.subr.mxu0 0.0
      %825 = vmatpush1.msra.mxu0 %v736
      %826 = vmatprep.subr.mxu0 0.0
      %827 = vmatpush1.msra.mxu0 0.0
      %828 = vmatprep.subr.mxu0 0.0
      %829 = vmatpush1.msra.mxu0 0.0
      %830 = vmatprep.subr.mxu0 0.0
      %831 = vmatpush1.msra.mxu0 0.0
      %832 = vmatprep.subr.mxu0 0.0
      %833 = vmatpush1.msra.mxu0 0.0
      %834 = vmatprep.subr.mxu0 0.0
      %835 = vmatpush1.msra.mxu0 0.0
      %836 = vmatprep.subr.mxu0 0.0
      %837 = vmatpush1.msra.mxu0 0.0
      %838 = vmatprep.subr.mxu0 0.0
      %839 = vmatpush1.msra.mxu0 0.0
      %840 = vmatprep.subr.mxu0 0.0
      %841 = vmatpush1.msra.mxu0 0.0
      %842 = vmatprep.subr.mxu0 0.0
      %843 = vmatpush1.msra.mxu0 0.0
      %844 = vmatprep.subr.mxu0 0.0
      %845 = vmatpush1.msra.mxu0 0.0
      %846 = vmatprep.subr.mxu0 0.0
      %847 = vmatpush1.msra.mxu0 0.0
      %848 = vmatprep.subr.mxu0 0.0
      %849 = vmatpush1.msra.mxu0 0.0
      %850 = vmatprep.subr.mxu0 0.0
      %851 = vmatpush1.msra.mxu0 0.0
      %852 = vmatprep.subr.mxu0 0.0
      %853 = vmatpush1.msra.mxu0 0.0
      %854 = vmatprep.subr.mxu0 0.0
      %855 = vmatpush1.msra.mxu0 0.0
      %856 = vmatprep.subr.mxu0 0.0
      %857 = vmatpush1.msra.mxu0 0.0
      %858 = vmatprep.subr.mxu0 0.0
      %859 = vmatpush1.msra.mxu0 0.0
      %860 = vmatprep.subr.mxu0 0.0
      %861 = vmatpush1.msra.mxu0 0.0
      %862 = vmatprep.subr.mxu0 0.0
      %863 = vmatpush1.msra.mxu0 0.0
      %864 = vmatprep.subr.mxu0 0.0
      %865 = vmatpush1.msra.mxu0 0.0
      %866 = vmatprep.subr.mxu0 0.0
      %867 = vmatpush1.msra.mxu0 0.0
      %868 = vmatprep.subr.mxu0 0.0
      %869 = vmatpush1.msra.mxu0 0.0
      %870 = vmatprep.subr.mxu0 0.0
      %871 = vmatpush1.msra.mxu0 0.0
      %872 = vmatprep.subr.mxu0 0.0
      %873 = vmatpush1.msra.mxu0 0.0
      %874 = vmatprep.subr.mxu0 0.0
      %875 = vmatpush1.msra.mxu0 0.0
      %876 = vmatprep.subr.mxu0 0.0
      %877 = vmatpush1.msra.mxu0 0.0
      %878 = vmatprep.subr.mxu0 0.0
      %879 = vmatpush1.msra.mxu0 0.0
      %880 = vmatprep.subr.mxu0 0.0
      %881 = vmatpush1.msra.mxu0 0.0
      %882 = vmatprep.mubr.f32.mxu0 0.0
      %883 = vmatmul.mubr.f32.gmra.mrb[0].mxu0 %v813
      %v884 = vpop.f32.mrb[0].mxu0
      %v885 = vadd.f32 0.0, %v884
      %v886 = vpop.f32.mrb[0].mxu0
      %887 = vmatprep.mubr.f32.mxu0 0.0
      %888 = vmatmul.mubr.f32.gmra.mrb[0].mxu0 %v816
      %v889 = vpop.f32.mrb[0].mxu0
      %v890 = vadd.f32 0.0, %v889
      %v891 = vpop.f32.mrb[0].mxu0
      %892 = vdwg.mxu0
      %v893 = vmul.f32 %v885, %v348
      %v894 = vmul.f32 %v890, %v349
      %v895 = vld [vmem:[%s7] sm:$0x1]
      %v897 = vlaneseq
      %v898 = vshrl.u32 %v897, 7
      %v899 = vsub.s32 0, %v898
      %v900 = vrot.slane %v895, %v899
      %v902 = vadd.f32 %v893, %v900
      %v903 = vadd.f32 %v894, %v900
      %v904 = vmax.f32 %v902, 0.0
      %v905 = vmax.f32 %v903, 0.0
      %v906 = vmul.f32 %v904, %v904
      %v907 = vmul.f32 %v905, %v905
      %908 = vadd.xlane.f32.xlu0 %v906
      %v909 = vpop.xlane.xlu0 %908
      %910 = vadd.xlane.f32.xlu0 %v907
      %v911 = vpop.xlane.xlu0 %910
      %v912 = vmax.f32 %v909, 1e-24
      %v913 = vmax.f32 %v911, 1e-24
      %v914 = vrsqrt.pop %v912
      %v915 = vrsqrt.pop %v913
      %v916 = vmul.f32 %v904, %v914
      %v917 = vmul.f32 %v905, %v915
      %918 = vst [vmem:[%s325] sm:$0xff] %v916
      %919 = vst [vmem:[%s325 + $0x8] sm:$0xff] %v917
      %p920 = scmp.lt.s32.totalorder %s19, 1
      %s921 = scalar_select %p920, %s19, 1
      %s922 = smul.addr %s921, 2
      %s923 = smul.addr %s922, 8
      %s924 = scalar_lea.vmem %s8, %s923
      // Predicated region
      $region53: #{block_3hop_fused.1} parent=51 // pred_check
        %p925 = pneg %p215
      $region54: #{block_3hop_fused.1} parent=51 // pred_check_branch
        %927 = sbr.rel (%p925) target = $region56
      $region55: #{block_3hop_fused.1} parent=51 // pred_region
        _
      $region56: #{block_3hop_fused.1} parent=51 // pred_fallthru
        _
    $region52: #{block_3hop_fused.1} parent=5 // pred_fallthru
      _
    %p928 = scmp.le.s32.totalorder 2, %s14
    // Predicated region
    $region57: #{block_3hop_fused.1} parent=5 // pred_check
      %p929 = pneg %p928
    $region58: #{block_3hop_fused.1} parent=5 // pred_check_branch
      %931 = sbr.rel (%p929) target = $region60
    $region59: #{block_3hop_fused.1} parent=5 // pred_region
      %s932 = ssub.s32 %s14, 2
      // Predicated region
      $region61: #{block_3hop_fused.1} parent=59 // pred_check
        %p933 = pneg %p221
      $region62: #{block_3hop_fused.1} parent=59 // pred_check_branch
        %935 = sbr.rel (%p933) target = $region64
      $region63: #{block_3hop_fused.1} parent=59 // pred_region
        %p936 = scmp.lt.s32.totalorder %s20, 1
        %s937 = scalar_select %p936, %s20, 1
        %s938 = smul.addr %s937, 2
        %s939 = smul.addr %s938, 8
        %s940 = scalar_lea.vmem %s8, %s939
      $region64: #{block_3hop_fused.1} parent=59 // pred_fallthru
        _
    $region60: #{block_3hop_fused.1} parent=5 // pred_fallthru
      _
  $region6: #{block_3hop_fused.1} parent=0 // loop_footer
    %s18 = sadd.s32 1, %s14
  $region7: #{block_3hop_fused.1} parent=0 // loop_footer_branch
    %13 = sbr.rel target = $region3
  $region8: #{block_3hop_fused.1} parent=0 // loop_exit
    _

</llo_original>
